<compile_context>
chip_gen: v7x
topology: tpu7x:2x2x1
jax: 0.10.0
libtpu: 0.0.40
codegen_flags: <defaults>
</compile_context>

<pallas_src>
import functools

import jax
import jax.numpy as jnp
from jax import lax
from jax.experimental import pallas as pl
from jax.experimental.pallas import tpu as pltpu

LANES = 128      # vector lane width (last dim of every block)
MAX_TM = 4096    # max rows per block: 4096 x 128 x f32 = 2 MiB (8 MiB double-buffered)
SUB = 8          # f32 sublane tile / vreg sublane count


def _round_up(x, m):
    return ((x + m - 1) // m) * m


def _sublane_tile(dtype):
    # Min second-minor tile per dtype: 8 (4B), 16 (2B), 32 (1B).
    return 8 * max(1, 4 // jnp.dtype(dtype).itemsize)


def _num_tensorcores():
    """2 for megacore-style chips (v4 / v5p / v7x), else 1. Safe fallback = 1."""
    try:
        kind = jax.devices()[0].device_kind.lower()
    except Exception:
        return 1
    return 2 if any(tag in kind for tag in ("v4", "v5p", "v7")) else 1


def _mse_partial_kernel(x_ref, t_ref, o_ref, acc_ref, *,
                        rows_valid, tm, blocks_per_shard, needs_mask):
    """Accumulates sum((x - t)^2) for one shard into o_ref[0, 0]."""
    s = pl.program_id(0)   # shard index ("parallel")
    i = pl.program_id(1)   # block index within shard ("arbitrary" reduction axis)

    @pl.when(i == 0)
    def _init():
        acc_ref[...] = jnp.zeros_like(acc_ref)

    d = x_ref[...].astype(jnp.float32) - t_ref[...].astype(jnp.float32)
    dd = d * d

    def _block_partial(v):
        # (tm, 128) -> (8, 128): pure vreg adds across sublane-tile groups (VPU only,
        # same VALU count as a full-block accumulate, no big-accumulator VMEM traffic).
        return jnp.sum(v.reshape(tm // SUB, SUB, LANES), axis=0)

    if needs_mask:
        g = s * blocks_per_shard + i          # global (unclamped) block index
        is_full = (g + 1) * tm <= rows_valid  # entirely inside the valid row range?

        @pl.when(is_full)
        def _add_full():                      # fast path: no iota / compare / select
            acc_ref[...] += _block_partial(dd)

        @pl.when(jnp.logical_not(is_full))
        def _add_ragged():
            # Ragged last block or clamped out-of-range shard block: zero invalid rows.
            # NOTE: must stay a select (jnp.where), not a multiplicative mask, since the
            # out-of-bounds rows may contain NaN/Inf garbage.
            row_ids = g * tm + lax.broadcasted_iota(jnp.int32, dd.shape, 0)
            acc_ref[...] += _block_partial(jnp.where(row_ids < rows_valid, dd, 0.0))
    else:
        acc_ref[...] += _block_partial(dd)

    @pl.when(i == pl.num_programs(1) - 1)
    def _finalize():
        o_ref[0, 0] = jnp.sum(acc_ref[...])   # one small cross-lane reduce per shard


def content_loss_forward(x, target, *, max_tm=MAX_TM):
    """Returns (input, loss) with loss = mean((input - target)^2) over all elements.

    The input is returned unchanged (identity pass-through), matching the PyTorch module.
    """
    assert x.shape == target.shape, "input and target must have identical shapes"
    n = x.size

    x_flat = x.reshape(-1)       # bitcast-free flatten (row-major)
    t_flat = target.reshape(-1)
    rows, rem = divmod(n, LANES)

    if rem != 0 or rows == 0:
        # Ragged (n % 128 != 0) or degenerate tiny input. Feeding the kernel would force
        # near-full prefix-slice HBM copies of both arrays; XLA's fused reduction reads
        # each input exactly once (the bandwidth roofline), so use it for this rare case.
        d = x_flat.astype(jnp.float32) - t_flat.astype(jnp.float32)
        return x, jnp.sum(d * d) / jnp.float32(n)

    # Zero-copy lane-dense views (the common C*H*W case).
    x2 = x_flat.reshape(rows, LANES)
    t2 = t_flat.reshape(rows, LANES)

    # Block rows: as large as allowed, aligned to the dtype sublane tile.
    sub = max(_sublane_tile(x.dtype), _sublane_tile(target.dtype))
    tm = min(_round_up(max_tm, sub), _round_up(rows, sub))

    blocks_total = pl.cdiv(rows, tm)
    shards = min(_num_tensorcores(), blocks_total)   # 1 on v5e/v6e, up to 2 on v4/v5p/v7x
    bps = pl.cdiv(blocks_total, shards)               # blocks per shard
    needs_mask = (shards * bps * tm) != rows
    last_block = blocks_total - 1

    def in_map(s, i):
        # Clamp so out-of-range shard/block indices re-read the last valid block
        # (their contribution is zeroed inside the kernel).
        return (jnp.minimum(s * bps + i, last_block), 0)

    kernel = functools.partial(
        _mse_partial_kernel,
        rows_valid=rows, tm=tm, blocks_per_shard=bps, needs_mask=needs_mask)

    itemsize = x2.dtype.itemsize + t2.dtype.itemsize
    cost = pl.CostEstimate(
        flops=3 * rows * LANES,                 # sub + mul + add per element
        transcendentals=0,
        bytes_accessed=rows * LANES * itemsize + shards * 4)

    partials = pl.pallas_call(
        kernel,
        out_shape=jax.ShapeDtypeStruct((shards, 1), jnp.float32),
        grid_spec=pltpu.PrefetchScalarGridSpec(
            num_scalar_prefetch=0,
            grid=(shards, bps),
            in_specs=[
                pl.BlockSpec((tm, LANES), in_map),
                pl.BlockSpec((tm, LANES), in_map),
            ],
            out_specs=pl.BlockSpec((1, 1), lambda s, i: (s, 0),
                                   memory_space=pltpu.SMEM),
            scratch_shapes=[pltpu.VMEM((SUB, LANES), jnp.float32)],  # one-vreg accumulator
        ),
        compiler_params=pltpu.CompilerParams(
            dimension_semantics=("parallel", "arbitrary")),
        cost_estimate=cost,
    )(x2, t2)

    loss = jnp.sum(partials) / jnp.float32(n)
    # Module returns the input unchanged (identity pass-through); loss is a side value.
    return x, loss


if __name__ == "__main__":
    key = jax.random.PRNGKey(0)
    k1, k2, k3, k4, k5, k6 = jax.random.split(key, 6)

    # Small NCHW feature-map shape consistent with a VGG feature layer input.
    B, C, H, W = 2, 4, 16, 16
    x = jax.random.normal(k1, (B, C, H, W), dtype=jnp.float32)
    target = jax.random.normal(k2, (B, C, H, W), dtype=jnp.float32)  # detached target

    out, loss = content_loss_forward(x, target)
    out = jax.block_until_ready(out)
    loss = jax.block_until_ready(loss)

    ref_loss = jnp.mean((x - target) ** 2)
    assert jnp.allclose(loss, ref_loss, rtol=1e-5, atol=1e-6), (loss, ref_loss)
    assert jnp.array_equal(out, x)  # forward returns input unchanged

    # Exercise the multi-block / masked (rows % tm != 0) Pallas path at a small shape
    # by forcing a small block size.
    x_b = jax.random.normal(k3, (2, 4, 30, 128), dtype=jnp.float32)
    t_b = jax.random.normal(k4, (2, 4, 30, 128), dtype=jnp.float32)
    out_b, loss_b = content_loss_forward(x_b, t_b, max_tm=64)
    loss_b = jax.block_until_ready(loss_b)
    ref_b = jnp.mean((x_b - t_b) ** 2)
    assert jnp.allclose(loss_b, ref_b, rtol=1e-5, atol=1e-6), (loss_b, ref_b)
    assert jnp.array_equal(out_b, x_b)

    # Ragged (n % 128 != 0) inputs take the copy-free fused-reduction path.
    x_c = jax.random.normal(k5, (2, 3, 11, 13), dtype=jnp.float32)
    t_c = jax.random.normal(k6, (2, 3, 11, 13), dtype=jnp.float32)
    out_c, loss_c = content_loss_forward(x_c, t_c)
    loss_c = jax.block_until_ready(loss_c)
    ref_c = jnp.mean((x_c - t_c) ** 2)
    assert jnp.allclose(loss_c, ref_c, rtol=1e-5, atol=1e-6), (loss_c, ref_c)
    assert jnp.array_equal(out_c, x_c)

    print("KERNEL_OK")
</pallas_src>

<mosaic_0001>
module attributes {stable_mosaic.version = 11 : i64} {
  func.func @_mse_partial_kernel(%arg0: i32, %arg1: i32, %arg2: memref<16x128xf32, #tpu.memory_space<vmem>>, %arg3: memref<16x128xf32, #tpu.memory_space<vmem>>, %arg4: memref<1x1xf32, #tpu.memory_space<smem>>, %arg5: memref<8x128xf32, #tpu.memory_space<vmem>>) attributes {dimension_semantics = [#tpu.dimension_semantics<parallel>, #tpu.dimension_semantics<arbitrary>], iteration_bounds = array<i64: 1, 1>, scalar_prefetch = 0 : i64, scratch_operands = 1 : i64, tpu.core_type = #tpu.core_type<tc>, window_params = [{transform_indices = @transform_0, window_bounds = array<i64: 16, 128>}, {transform_indices = @transform_1, window_bounds = array<i64: 16, 128>}, {transform_indices = @transform_2, window_bounds = array<i64: 1, 1>}]} {
    %c0_i32 = arith.constant 0 : i32
    %0 = arith.cmpi eq, %arg1, %c0_i32 : i32
    %1 = arith.extui %0 : i1 to i32
    %c0_i32_0 = arith.constant 0 : i32
    %2 = arith.cmpi ne, %1, %c0_i32_0 : i32
    scf.if %2 {
      %cst_10 = arith.constant 0.000000e+00 : f32
      %15 = vector.broadcast %cst_10 : f32 to vector<8x128xf32>
      %c0_11 = arith.constant 0 : index
      %c0_12 = arith.constant 0 : index
      %16 = vector.load %arg5[%c0_11, %c0_12] : memref<8x128xf32, #tpu.memory_space<vmem>>, vector<8x128xf32>
      tpu.vector_store %arg5[%c0_11, %c0_12], %15 {strides = array<i32>} : memref<8x128xf32, #tpu.memory_space<vmem>>, vector<8x128xf32>,
    } else {
    }
    %c0 = arith.constant 0 : index
    %c0_1 = arith.constant 0 : index
    %3 = vector.load %arg2[%c0, %c0_1] : memref<16x128xf32, #tpu.memory_space<vmem>>, vector<16x128xf32>
    %c0_2 = arith.constant 0 : index
    %c0_3 = arith.constant 0 : index
    %4 = vector.load %arg3[%c0_2, %c0_3] : memref<16x128xf32, #tpu.memory_space<vmem>>, vector<16x128xf32>
    %5 = arith.subf %3, %4 : vector<16x128xf32>
    %6 = arith.mulf %5, %5 : vector<16x128xf32>
    %c0_4 = arith.constant 0 : index
    %c0_5 = arith.constant 0 : index
    %7 = vector.load %arg5[%c0_4, %c0_5] : memref<8x128xf32, #tpu.memory_space<vmem>>, vector<8x128xf32>
    %8 = vector.shape_cast %6 : vector<16x128xf32> to vector<2x8x128xf32>
    %cst = arith.constant dense<0.000000e+00> : vector<8x128xf32>
    %9 = vector.multi_reduction <add>, %8, %cst [0] : vector<2x8x128xf32> to vector<8x128xf32>
    %10 = arith.addf %7, %9 : vector<8x128xf32>
    %c0_6 = arith.constant 0 : index
    %c0_7 = arith.constant 0 : index
    %11 = vector.load %arg5[%c0_6, %c0_7] : memref<8x128xf32, #tpu.memory_space<vmem>>, vector<8x128xf32>
    tpu.vector_store %arg5[%c0_6, %c0_7], %10 {strides = array<i32>} : memref<8x128xf32, #tpu.memory_space<vmem>>, vector<8x128xf32>,
    %c0_i32_8 = arith.constant 0 : i32
    %12 = arith.cmpi eq, %arg1, %c0_i32_8 : i32
    %13 = arith.extui %12 : i1 to i32
    %c0_i32_9 = arith.constant 0 : i32
    %14 = arith.cmpi ne, %13, %c0_i32_9 : i32
    scf.if %14 {
      %c0_10 = arith.constant 0 : index
      %c0_11 = arith.constant 0 : index
      %15 = vector.load %arg5[%c0_10, %c0_11] : memref<8x128xf32, #tpu.memory_space<vmem>>, vector<8x128xf32>
      %16 = vector.shape_cast %15 : vector<8x128xf32> to vector<1x8x128xf32>
      %cst_12 = arith.constant dense<0.000000e+00> : vector<1xf32>
      %17 = vector.multi_reduction <add>, %16, %cst_12 [1, 2] : vector<1x8x128xf32> to vector<1xf32>
      %18 = vector.shape_cast %17 : vector<1xf32> to vector<1x1x1xf32>
      %19 = vector.extract %18[0, 0, 0] : f32 from vector<1x1x1xf32>
      %c0_13 = arith.constant 0 : index
      %c0_14 = arith.constant 0 : index
      %20 = memref.load %arg4[%c0_13, %c0_14] : memref<1x1xf32, #tpu.memory_space<smem>>
      memref.store %19, %arg4[%c0_13, %c0_14] : memref<1x1xf32, #tpu.memory_space<smem>>
    } else {
    }
    return
  }
  func.func @transform_0(%arg0: i32, %arg1: i32) -> (i32, i32) {
    %c1_i32 = arith.constant 1 : i32
    %0 = arith.muli %arg0, %c1_i32 : i32
    %1 = arith.addi %0, %arg1 : i32
    %c0_i32 = arith.constant 0 : i32
    %2 = arith.minsi %1, %c0_i32 : i32
    %c0_i32_0 = arith.constant 0 : i32
    %c0_i32_1 = arith.constant 0 : i32
    return %2, %c0_i32_0 : i32, i32
  }
  func.func @transform_1(%arg0: i32, %arg1: i32) -> (i32, i32) {
    %c1_i32 = arith.constant 1 : i32
    %0 = arith.muli %arg0, %c1_i32 : i32
    %1 = arith.addi %0, %arg1 : i32
    %c0_i32 = arith.constant 0 : i32
    %2 = arith.minsi %1, %c0_i32 : i32
    %c0_i32_0 = arith.constant 0 : i32
    %c0_i32_1 = arith.constant 0 : i32
    return %2, %c0_i32_0 : i32, i32
  }
  func.func @transform_2(%arg0: i32, %arg1: i32) -> (i32, i32) {
    %c0_i32 = arith.constant 0 : i32
    %c0_i32_0 = arith.constant 0 : i32
    return %arg0, %c0_i32 : i32, i32
  }
}

</mosaic_0001>

<llo_original>
// kernel: tpu_custom_call.1
$region0: #{tpu_custom_call.1}
  #allocation0 [shape = 'u32[]', space=smem, size = 0x4, offset = 0x4, fixed_abs, tag = 'smem constant byte address 0x4 - core index']
  #allocation1 [shape = 'u32[144,128]{1,0:T(1,128)}', space=vmem, size = 0x12000, scoped, tag = 'internal scratch']
  #allocation2 [shape = 'f32[8,128]{1,0:T(8,128)}', space=vmem, size = 0x1000, scoped, tag = 'scratch operand']
  %s0 = inlined_call_operand.hbm [shape: f32[16,128], index: 0, kind: input, shape index: {}]
  %s1 = inlined_call_operand.hbm [shape: f32[16,128], index: 1, kind: input, shape index: {}]
  %s2 = inlined_call_operand.hbm [shape: f32[1,1], index: 2, kind: output, shape index: {}]
  %s3 = sld [smem:[#allocation0]]
  $region34: #{tpu_custom_call.1} parent=0
    _
  %s5 = ssub.s32 1, %s3
  %s6 = scalar_select 0, %s5, %s3
  $region1: #{tpu_custom_call.1} parent=0
    #allocation3 [shape = 'u8[8192]{0}', space=vmem, size = 0x2000, scoped, tag = 'input window, operand 0, single buffered']
    #allocation4 [shape = 's32[1]{0}', space=sflag, size = 0x4, scoped, tag = 'scoped memory for tpu_custom_call.1']
    #allocation5 [shape = 's32[1]{0}', space=sflag, size = 0x4, scoped, tag = 'scoped memory for tpu_custom_call.1']
    #allocation6 [shape = 'u8[8192]{0}', space=vmem, size = 0x2000, scoped, tag = 'input window, operand 1, single buffered']
    #allocation7 [shape = 's32[1]{0}', space=sflag, size = 0x4, scoped, tag = 'scoped memory for tpu_custom_call.1']
    #allocation8 [shape = 'u8[512]{0}', space=smem, size = 0x200, scoped, tag = 'output window, operand 0, single buffered']
    %7 = vsyncpa [#allocation4], 0
    %8 = vsyncpa [#allocation7], 0
    %9 = vsyncpa [#allocation5], 0
    // Predicated region
    $region2: #{tpu_custom_call.1} parent=1 // pred_check
      _
    $region3: #{tpu_custom_call.1} parent=1 // pred_check_branch
      %11 = sbr.rel (0) target = $region5
    $region4: #{tpu_custom_call.1} parent=1 // pred_region
      %s12 = sadd.s32 0, 0
      %p13 = scmp.lt.s32.totalorder %s12, 0
      %s14 = scalar_select %p13, %s12, 0
      %s15 = smul.u32 2, %s14
      %s17 = ssub.s32 256, 256
      %18 = vsyncadd [#allocation4], %s17
      %s19 = smul.addr %s15, 128
      %s20 = scalar_lea.hbm %s0, %s19
      %s21 = sshll.u32 [#allocation3], 4
      %s22 = int_to_ptr.vmem [resolvable:$true] %s21
      %27 = dma.hbm_to_vmem [thread:$0]  %s20, 256, %s22, [#allocation4], 128, 128, 8
    $region5: #{tpu_custom_call.1} parent=1 // pred_fallthru
      _
    // Predicated region
    $region6: #{tpu_custom_call.1} parent=1 // pred_check
      _
    $region7: #{tpu_custom_call.1} parent=1 // pred_check_branch
      %29 = sbr.rel (0) target = $region9
    $region8: #{tpu_custom_call.1} parent=1 // pred_region
      %s30 = sadd.s32 0, 0
      %p31 = scmp.lt.s32.totalorder %s30, 0
      %s32 = scalar_select %p31, %s30, 0
      %s33 = smul.u32 2, %s32
      %s35 = ssub.s32 256, 256
      %36 = vsyncadd [#allocation7], %s35
      %s37 = smul.addr %s33, 128
      %s38 = scalar_lea.hbm %s1, %s37
      %s39 = sshll.u32 [#allocation6], 4
      %s40 = int_to_ptr.vmem [resolvable:$true] %s39
      %45 = dma.hbm_to_vmem [thread:$0]  %s38, 256, %s40, [#allocation7], 128, 128, 8
    $region9: #{tpu_custom_call.1} parent=1 // pred_fallthru
      _
    // Predicated region
    $region10: #{tpu_custom_call.1} parent=1 // pred_check
      _
    $region11: #{tpu_custom_call.1} parent=1 // pred_check_branch
      %47 = sbr.rel (0) target = $region13
    $region12: #{tpu_custom_call.1} parent=1 // pred_region
      %48 = dma.done [#allocation4], 256
    $region13: #{tpu_custom_call.1} parent=1 // pred_fallthru
      _
    // Predicated region
    $region14: #{tpu_custom_call.1} parent=1 // pred_check
      _
    $region15: #{tpu_custom_call.1} parent=1 // pred_check_branch
      %50 = sbr.rel (0) target = $region17
    $region16: #{tpu_custom_call.1} parent=1 // pred_region
      %51 = dma.done [#allocation7], 256
    $region17: #{tpu_custom_call.1} parent=1 // pred_fallthru
      _
    %s52 = sadd.s32 0, 0
    %p53 = scmp.lt.s32.totalorder %s52, 0
    %s54 = scalar_select %p53, %s52, 0
    %s55 = smul.u32 2, %s54
    %s56 = sadd.s32 0, 0
    %p57 = scmp.lt.s32.totalorder %s56, 0
    %s58 = scalar_select %p57, %s56, 0
    %s59 = smul.u32 2, %s58
    %p60 = scmp.eq.s32.totalorder 0, 0
    // Predicated region
    $region18: #{tpu_custom_call.1} parent=1 // pred_check
      %p61 = pneg %p60
    $region19: #{tpu_custom_call.1} parent=1 // pred_check_branch
      %63 = sbr.rel (%p61) target = $region21
    $region20: #{tpu_custom_call.1} parent=1 // pred_region
      %64 = vst [vmem:[#allocation2] sm:$0xff] 0.0
    $region21: #{tpu_custom_call.1} parent=1 // pred_fallthru
      _
    %v65 = vld [vmem:[#allocation3] sm:$0xff]
    %v66 = vld [vmem:[#allocation3 + $0x8] sm:$0xff]
    %v67 = vld [vmem:[#allocation6] sm:$0xff]
    %v68 = vld [vmem:[#allocation6 + $0x8] sm:$0xff]
    %v69 = vsub.f32 %v65, %v67
    %v70 = vsub.f32 %v66, %v68
    %v71 = vmul.f32 %v69, %v69
    %v72 = vmul.f32 %v70, %v70
    %v73 = vld [vmem:[#allocation2] sm:$0xff]
    %v74 = vadd.f32 %v71, %v72
    %v75 = vadd.f32 %v73, %v74
    %76 = vst [vmem:[#allocation2] sm:$0xff] %v75
    // Predicated region
    $region22: #{tpu_custom_call.1} parent=1 // pred_check
      %p77 = pneg %p60
    $region23: #{tpu_custom_call.1} parent=1 // pred_check_branch
      %79 = sbr.rel (%p77) target = $region25
    $region24: #{tpu_custom_call.1} parent=1 // pred_region
      %v80 = vld [vmem:[#allocation2] sm:$0xff]
      %81 = vadd.xlane.f32.xlu0 %v80
      %v82 = vpop.xlane.xlu0 %81
      %v83 = vrot.slane %v82, 4
      %v84 = vadd.f32 %v82, %v83
      %v85 = vrot.slane %v84, 2
      %v86 = vadd.f32 %v84, %v85
      %v87 = vrot.slane %v86, 1
      %v88 = vadd.f32 %v86, %v87
      %s89 = vtos %v88
      %s90 = scalar_lea.smem [#allocation8], 0
      %91 = sst [smem:[%s90]] %s89
    $region25: #{tpu_custom_call.1} parent=1 // pred_fallthru
      _
    // Predicated region
    $region26: #{tpu_custom_call.1} parent=1 // pred_check
      _
    $region27: #{tpu_custom_call.1} parent=1 // pred_check_branch
      %93 = sbr.rel (0) target = $region29
    $region28: #{tpu_custom_call.1} parent=1 // pred_region
      %s95 = ssub.s32 16, 16
      %96 = vsyncadd [#allocation5], %s95
      %99 = dma.smem_to_hbm [#allocation8], 16, %s2, [#allocation5]
    $region29: #{tpu_custom_call.1} parent=1 // pred_fallthru
      _
    // Predicated region
    $region30: #{tpu_custom_call.1} parent=1 // pred_check
      _
    $region31: #{tpu_custom_call.1} parent=1 // pred_check_branch
      %101 = sbr.rel (0) target = $region33
    $region32: #{tpu_custom_call.1} parent=1 // pred_region
      %102 = dma.done [#allocation5], 16
    $region33: #{tpu_custom_call.1} parent=1 // pred_fallthru
      _
    %103 = sfence
    %104 = vsyncpa [#allocation4], 1
    %105 = vsyncpa [#allocation7], 1
    %106 = vsyncpa [#allocation5], 1

</llo_original>
